<compile_context>
chip_gen: v7x
topology: tpu7x:2x2x1
jax: 0.10.0
libtpu: 0.0.40
codegen_flags: <defaults>
</compile_context>

<pallas_src>
import functools

import jax
import jax.numpy as jnp
from jax.experimental import pallas as pl
from jax.experimental.pallas import tpu as pltpu

_LANE = 128


def _mlp_kernel(x_ref, w1_ref, b1_ref, w2_ref, b2_ref, w3_ref, b3_ref, o_ref):
    x = x_ref[...]                       # (2, TB)   batch on lanes
    w1 = w1_ref[...]                     # (10, 2)

    # fc1: K=2 -> two VPU broadcast multiply-adds, no MXU push/pop round trip.
    h1 = w1[:, 0:1] * x[0:1, :] + w1[:, 1:2] * x[1:2, :] + b1_ref[...]  # (10, TB)
    h1 = jnp.maximum(h1, 0.0)

    # fc2 / fc3: MXU is otherwise idle, plain dots with f32 accumulation.
    h2 = jnp.dot(w2_ref[...], h1, preferred_element_type=jnp.float32) + b2_ref[...]
    h2 = jnp.maximum(h2, 0.0)            # (10, TB)

    h3 = jnp.dot(w3_ref[...], h2, preferred_element_type=jnp.float32) + b3_ref[...]
    o_ref[...] = h3.astype(o_ref.dtype)  # (3, TB)   lane-dense store


def _choose_tb(batch: int) -> int:
    # Largest lane-aligned tile up to 2048 lanes; VMEM is never the constraint
    # ((2+10+10+3)*TB*4 B double-buffered is < 1 MiB even at TB=2048).
    aligned = -(-batch // _LANE) * _LANE
    return max(_LANE, min(aligned, 2048))


@functools.partial(jax.jit, static_argnames=("tb",))
def rps_model_forward(x, params, tb=None):
    """x: (B, 2) float32.  params: PyTorch-layout weights (out, in), biases (out, 1)."""
    w1, b1 = params["w1"], params["b1"]
    w2, b2 = params["w2"], params["b2"]
    w3, b3 = params["w3"], params["b3"]

    B = x.shape[0]
    if tb is None:
        tb = _choose_tb(B)
    n_tiles = pl.cdiv(B, tb)
    b_pad = n_tiles * tb

    # Put batch on the lane axis; zero-pad to a tile multiple (padding sliced off below).
    x_t = jnp.zeros((2, b_pad), x.dtype).at[:, :B].set(x.T)

    const = lambda shape: pl.BlockSpec(shape, lambda i: (0, 0))  # VMEM-resident weights

    out_t = pl.pallas_call(
        _mlp_kernel,
        out_shape=jax.ShapeDtypeStruct((3, b_pad), jnp.float32),
        grid=(n_tiles,),
        in_specs=[
            pl.BlockSpec((2, tb), lambda i: (0, i)),   # x tile, double-buffered
            const(w1.shape), const(b1.shape),
            const(w2.shape), const(b2.shape),
            const(w3.shape), const(b3.shape),
        ],
        out_specs=pl.BlockSpec((3, tb), lambda i: (0, i)),
        compiler_params=pltpu.CompilerParams(
            dimension_semantics=("parallel",)),        # v7x: shard batch over both TCs
    )(x_t, w1, b1, w2, b2, w3, b3)

    return out_t[:, :B].T                              # back to (B, 3)


def init_params(key):
    """Deterministic init matching nn.Linear: fc1(2->10), fc2(10->10), fc3(10->3).
    Weights kept in PyTorch (out, in) layout; biases stored as (out, 1) columns."""
    ks = jax.random.split(key, 6)

    def linear(kw, kb, fan_in, fan_out):
        bound = 1.0 / (fan_in ** 0.5)
        w = jax.random.uniform(kw, (fan_out, fan_in), jnp.float32, -bound, bound)
        b = jax.random.uniform(kb, (fan_out, 1), jnp.float32, -bound, bound)
        return w, b

    w1, b1 = linear(ks[0], ks[1], 2, 10)
    w2, b2 = linear(ks[2], ks[3], 10, 10)
    w3, b3 = linear(ks[4], ks[5], 10, 3)
    return {"w1": w1, "b1": b1, "w2": w2, "b2": b2, "w3": w3, "b3": b3}


def reference_forward(x, p):
    h = jnp.maximum(x @ p["w1"].T + p["b1"].T, 0.0)
    h = jnp.maximum(h @ p["w2"].T + p["b2"].T, 0.0)
    return h @ p["w3"].T + p["b3"].T


if __name__ == "__main__":
    key = jax.random.PRNGKey(0)
    k_param, k_x1, k_x2 = jax.random.split(key, 3)
    params = init_params(k_param)

    # Small batch: single 128-lane tile (padded from 8 -> 128).
    x_small = jax.random.normal(k_x1, (8, 2), jnp.float32)
    out_small = jax.block_until_ready(rps_model_forward(x_small, params))
    assert out_small.shape == (8, 3)
    assert jnp.allclose(out_small, reference_forward(x_small, params), atol=1e-5, rtol=1e-5)

    # Non-tile-multiple batch with forced tb=128: 3 pipelined grid steps + padded tail.
    x_big = jax.random.normal(k_x2, (300, 2), jnp.float32)
    out_big = jax.block_until_ready(rps_model_forward(x_big, params, tb=128))
    assert out_big.shape == (300, 3)
    assert jnp.allclose(out_big, reference_forward(x_big, params), atol=1e-5, rtol=1e-5)

    print("KERNEL_OK")
</pallas_src>

<mosaic_0001>
module attributes {stable_mosaic.version = 11 : i64} {
  func.func @_mlp_kernel(%arg0: i32, %arg1: memref<2x128xf32, #tpu.memory_space<vmem>>, %arg2: memref<10x2xf32, #tpu.memory_space<vmem>>, %arg3: memref<10x1xf32, #tpu.memory_space<vmem>>, %arg4: memref<10x10xf32, #tpu.memory_space<vmem>>, %arg5: memref<10x1xf32, #tpu.memory_space<vmem>>, %arg6: memref<3x10xf32, #tpu.memory_space<vmem>>, %arg7: memref<3x1xf32, #tpu.memory_space<vmem>>, %arg8: memref<3x128xf32, #tpu.memory_space<vmem>>) attributes {dimension_semantics = [#tpu.dimension_semantics<parallel>], iteration_bounds = array<i64: 1>, scalar_prefetch = 0 : i64, scratch_operands = 0 : i64, tpu.core_type = #tpu.core_type<tc>, window_params = [{transform_indices = @transform_0, window_bounds = array<i64: 2, 128>}, {pipeline_mode = #tpu.pipeline_mode<synchronous>, transform_indices = @transform_1, window_bounds = array<i64: 10, 2>}, {pipeline_mode = #tpu.pipeline_mode<synchronous>, transform_indices = @transform_2, window_bounds = array<i64: 10, 1>}, {pipeline_mode = #tpu.pipeline_mode<synchronous>, transform_indices = @transform_3, window_bounds = array<i64: 10, 10>}, {pipeline_mode = #tpu.pipeline_mode<synchronous>, transform_indices = @transform_4, window_bounds = array<i64: 10, 1>}, {pipeline_mode = #tpu.pipeline_mode<synchronous>, transform_indices = @transform_5, window_bounds = array<i64: 3, 10>}, {pipeline_mode = #tpu.pipeline_mode<synchronous>, transform_indices = @transform_6, window_bounds = array<i64: 3, 1>}, {transform_indices = @transform_7, window_bounds = array<i64: 3, 128>}]} {
    %c0 = arith.constant 0 : index
    %c0_0 = arith.constant 0 : index
    %0 = vector.load %arg1[%c0, %c0_0] : memref<2x128xf32, #tpu.memory_space<vmem>>, vector<2x128xf32>
    %c0_1 = arith.constant 0 : index
    %c0_2 = arith.constant 0 : index
    %1 = vector.load %arg2[%c0_1, %c0_2] : memref<10x2xf32, #tpu.memory_space<vmem>>, vector<10x2xf32>
    %2 = vector.extract_strided_slice %1 {offsets = [0, 0], sizes = [10, 1], strides = [1, 1]} : vector<10x2xf32> to vector<10x1xf32>
    %3 = vector.extract_strided_slice %0 {offsets = [0, 0], sizes = [1, 128], strides = [1, 1]} : vector<2x128xf32> to vector<1x128xf32>
    %4 = vector.broadcast %2 : vector<10x1xf32> to vector<10x128xf32>
    %5 = vector.broadcast %3 : vector<1x128xf32> to vector<10x128xf32>
    %6 = arith.mulf %4, %5 : vector<10x128xf32>
    %7 = vector.extract_strided_slice %1 {offsets = [0, 1], sizes = [10, 1], strides = [1, 1]} : vector<10x2xf32> to vector<10x1xf32>
    %8 = vector.extract_strided_slice %0 {offsets = [1, 0], sizes = [1, 128], strides = [1, 1]} : vector<2x128xf32> to vector<1x128xf32>
    %9 = vector.broadcast %7 : vector<10x1xf32> to vector<10x128xf32>
    %10 = vector.broadcast %8 : vector<1x128xf32> to vector<10x128xf32>
    %11 = arith.mulf %9, %10 : vector<10x128xf32>
    %12 = arith.addf %6, %11 : vector<10x128xf32>
    %c0_3 = arith.constant 0 : index
    %c0_4 = arith.constant 0 : index
    %13 = vector.load %arg3[%c0_3, %c0_4] : memref<10x1xf32, #tpu.memory_space<vmem>>, vector<10x1xf32>
    %14 = vector.broadcast %13 : vector<10x1xf32> to vector<10x128xf32>
    %15 = arith.addf %12, %14 : vector<10x128xf32>
    %cst = arith.constant 0.000000e+00 : f32
    %16 = vector.broadcast %cst : f32 to vector<10x128xf32>
    %17 = arith.maximumf %15, %16 : vector<10x128xf32>
    %c0_5 = arith.constant 0 : index
    %c0_6 = arith.constant 0 : index
    %18 = vector.load %arg4[%c0_5, %c0_6] : memref<10x10xf32, #tpu.memory_space<vmem>>, vector<10x10xf32>
    %cst_7 = arith.constant dense<0.000000e+00> : vector<10x128xf32>
    %19 = tpu.matmul %18, %17, %cst_7 {dimension_numbers = #tpu.dot_dimension_numbers<[1], [0], [0], [1], [0, 0, 1, 1], [], []>} : vector<10x10xf32>, vector<10x128xf32>, vector<10x128xf32> -> vector<10x128xf32>
    %c0_8 = arith.constant 0 : index
    %c0_9 = arith.constant 0 : index
    %20 = vector.load %arg5[%c0_8, %c0_9] : memref<10x1xf32, #tpu.memory_space<vmem>>, vector<10x1xf32>
    %21 = vector.broadcast %20 : vector<10x1xf32> to vector<10x128xf32>
    %22 = arith.addf %19, %21 : vector<10x128xf32>
    %cst_10 = arith.constant 0.000000e+00 : f32
    %23 = vector.broadcast %cst_10 : f32 to vector<10x128xf32>
    %24 = arith.maximumf %22, %23 : vector<10x128xf32>
    %c0_11 = arith.constant 0 : index
    %c0_12 = arith.constant 0 : index
    %25 = vector.load %arg6[%c0_11, %c0_12] : memref<3x10xf32, #tpu.memory_space<vmem>>, vector<3x10xf32>
    %cst_13 = arith.constant dense<0.000000e+00> : vector<3x128xf32>
    %26 = tpu.matmul %25, %24, %cst_13 {dimension_numbers = #tpu.dot_dimension_numbers<[1], [0], [0], [1], [0, 0, 1, 1], [], []>} : vector<3x10xf32>, vector<10x128xf32>, vector<3x128xf32> -> vector<3x128xf32>
    %c0_14 = arith.constant 0 : index
    %c0_15 = arith.constant 0 : index
    %27 = vector.load %arg7[%c0_14, %c0_15] : memref<3x1xf32, #tpu.memory_space<vmem>>, vector<3x1xf32>
    %28 = vector.broadcast %27 : vector<3x1xf32> to vector<3x128xf32>
    %29 = arith.addf %26, %28 : vector<3x128xf32>
    %c0_16 = arith.constant 0 : index
    %c0_17 = arith.constant 0 : index
    %30 = vector.load %arg8[%c0_16, %c0_17] : memref<3x128xf32, #tpu.memory_space<vmem>>, vector<3x128xf32>
    tpu.vector_store %arg8[%c0_16, %c0_17], %29 {strides = array<i32>} : memref<3x128xf32, #tpu.memory_space<vmem>>, vector<3x128xf32>,
    return
  }
  func.func @transform_0(%arg0: i32) -> (i32, i32) {
    %c0_i32 = arith.constant 0 : i32
    %c0_i32_0 = arith.constant 0 : i32
    return %c0_i32, %arg0 : i32, i32
  }
  func.func @transform_1(%arg0: i32) -> (i32, i32) {
    %c0_i32 = arith.constant 0 : i32
    %c0_i32_0 = arith.constant 0 : i32
    %c0_i32_1 = arith.constant 0 : i32
    return %c0_i32, %c0_i32_0 : i32, i32
  }
  func.func @transform_2(%arg0: i32) -> (i32, i32) {
    %c0_i32 = arith.constant 0 : i32
    %c0_i32_0 = arith.constant 0 : i32
    %c0_i32_1 = arith.constant 0 : i32
    return %c0_i32, %c0_i32_0 : i32, i32
  }
  func.func @transform_3(%arg0: i32) -> (i32, i32) {
    %c0_i32 = arith.constant 0 : i32
    %c0_i32_0 = arith.constant 0 : i32
    %c0_i32_1 = arith.constant 0 : i32
    return %c0_i32, %c0_i32_0 : i32, i32
  }
  func.func @transform_4(%arg0: i32) -> (i32, i32) {
    %c0_i32 = arith.constant 0 : i32
    %c0_i32_0 = arith.constant 0 : i32
    %c0_i32_1 = arith.constant 0 : i32
    return %c0_i32, %c0_i32_0 : i32, i32
  }
  func.func @transform_5(%arg0: i32) -> (i32, i32) {
    %c0_i32 = arith.constant 0 : i32
    %c0_i32_0 = arith.constant 0 : i32
    %c0_i32_1 = arith.constant 0 : i32
    return %c0_i32, %c0_i32_0 : i32, i32
  }
  func.func @transform_6(%arg0: i32) -> (i32, i32) {
    %c0_i32 = arith.constant 0 : i32
    %c0_i32_0 = arith.constant 0 : i32
    %c0_i32_1 = arith.constant 0 : i32
    return %c0_i32, %c0_i32_0 : i32, i32
  }
  func.func @transform_7(%arg0: i32) -> (i32, i32) {
    %c0_i32 = arith.constant 0 : i32
    %c0_i32_0 = arith.constant 0 : i32
    return %c0_i32, %arg0 : i32, i32
  }
}

</mosaic_0001>

<llo_original>
// kernel: rps_model_forward.1
$region0: #{rps_model_forward.1}
  #allocation0 [shape = 'u32[]', space=smem, size = 0x4, offset = 0x4, fixed_abs, tag = 'smem constant byte address 0x4 - core index']
  #allocation1 [shape = 'u32[144,128]{1,0:T(1,128)}', space=vmem, size = 0x12000, scoped, tag = 'internal scratch']
  %s0 = inlined_call_operand.vmem [shape: f32[2,128], index: 0, kind: input, shape index: {}]
  %s1 = inlined_call_operand.vmem [shape: f32[10,2], index: 1, kind: input, shape index: {}]
  %s2 = inlined_call_operand.vmem [shape: f32[10,1], index: 2, kind: input, shape index: {}]
  %s3 = inlined_call_operand.vmem [shape: f32[10,10], index: 3, kind: input, shape index: {}]
  %s4 = inlined_call_operand.vmem [shape: f32[10,1], index: 4, kind: input, shape index: {}]
  %s5 = inlined_call_operand.vmem [shape: f32[3,10], index: 5, kind: input, shape index: {}]
  %s6 = inlined_call_operand.vmem [shape: f32[3,1], index: 6, kind: input, shape index: {}]
  %s7 = inlined_call_operand.vmem [shape: f32[3,128], index: 7, kind: output, shape index: {}]
  %s8 = sld [smem:[#allocation0]]
  $region38: #{rps_model_forward.1} parent=0
    _
  %s10 = ssub.s32 1, %s8
  %s11 = scalar_select 0, %s10, %s8
  // Predicated region
  $region2: #{rps_model_forward.1} parent=0 // pred_check
    _
  $region3: #{rps_model_forward.1} parent=0 // pred_check_branch
    %13 = sbr.rel (0) target = $region5
  $region4: #{rps_model_forward.1} parent=0 // pred_region
    _
  $region5: #{rps_model_forward.1} parent=0 // pred_fallthru
    _
  // Predicated region
  $region6: #{rps_model_forward.1} parent=0 // pred_check
    _
  $region7: #{rps_model_forward.1} parent=0 // pred_check_branch
    %15 = sbr.rel (0) target = $region9
  $region8: #{rps_model_forward.1} parent=0 // pred_region
    _
  $region9: #{rps_model_forward.1} parent=0 // pred_fallthru
    _
  // Predicated region
  $region10: #{rps_model_forward.1} parent=0 // pred_check
    _
  $region11: #{rps_model_forward.1} parent=0 // pred_check_branch
    %17 = sbr.rel (0) target = $region13
  $region12: #{rps_model_forward.1} parent=0 // pred_region
    _
  $region13: #{rps_model_forward.1} parent=0 // pred_fallthru
    _
  // Predicated region
  $region14: #{rps_model_forward.1} parent=0 // pred_check
    _
  $region15: #{rps_model_forward.1} parent=0 // pred_check_branch
    %19 = sbr.rel (0) target = $region17
  $region16: #{rps_model_forward.1} parent=0 // pred_region
    _
  $region17: #{rps_model_forward.1} parent=0 // pred_fallthru
    _
  // Predicated region
  $region18: #{rps_model_forward.1} parent=0 // pred_check
    _
  $region19: #{rps_model_forward.1} parent=0 // pred_check_branch
    %21 = sbr.rel (0) target = $region21
  $region20: #{rps_model_forward.1} parent=0 // pred_region
    _
  $region21: #{rps_model_forward.1} parent=0 // pred_fallthru
    _
  // Predicated region
  $region22: #{rps_model_forward.1} parent=0 // pred_check
    _
  $region23: #{rps_model_forward.1} parent=0 // pred_check_branch
    %23 = sbr.rel (0) target = $region25
  $region24: #{rps_model_forward.1} parent=0 // pred_region
    _
  $region25: #{rps_model_forward.1} parent=0 // pred_fallthru
    _
  // Predicated region
  $region26: #{rps_model_forward.1} parent=0 // pred_check
    _
  $region27: #{rps_model_forward.1} parent=0 // pred_check_branch
    %25 = sbr.rel (0) target = $region29
  $region28: #{rps_model_forward.1} parent=0 // pred_region
    _
  $region29: #{rps_model_forward.1} parent=0 // pred_fallthru
    _
  %v26 = vld [vmem:[%s0] sm:$0x3]
  %v27 = vld [vmem:[%s1] sm:$0xff]
  %v28 = vld [vmem:[%s1 + $0x8] sm:$0x3]
  %30 = vset.pattern.permute.xlu0 0
  %31 = vperm.xlu0 %30, %v27
  %v32 = vpop.permute.xlu0 %31
  %35 = vset.pattern.permute.xlu0 0
  %36 = vperm.xlu0 %35, %v28
  %v37 = vpop.permute.xlu0 %36
  %v39 = vlaneseq
  %v40 = vshrl.u32 %v39, 7
  %v41 = vsub.s32 0, %v40
  %v42 = vrot.slane %v26, %v41
  %v43 = vmul.f32 %v32, %v42
  %v44 = vmul.f32 %v37, %v42
  %45 = vset.pattern.permute.xlu0 1
  %46 = vperm.xlu0 %45, %v27
  %v47 = vpop.permute.xlu0 %46
  %49 = vset.pattern.permute.xlu0 1
  %50 = vperm.xlu0 %49, %v28
  %v51 = vpop.permute.xlu0 %50
  %v53 = vlaneseq
  %v54 = vshrl.u32 %v53, 7
  %v55 = vsub.s32 1, %v54
  %v56 = vrot.slane %v26, %v55
  %v57 = vmul.f32 %v47, %v56
  %v58 = vmul.f32 %v51, %v56
  %v59 = vadd.f32 %v43, %v57
  %v60 = vadd.f32 %v44, %v58
  %v61 = vld [vmem:[%s2] sm:$0xff]
  %v62 = vld [vmem:[%s2 + $0x8] sm:$0x3]
  %64 = vset.pattern.permute.xlu0 0
  %65 = vperm.xlu0 %64, %v61
  %v66 = vpop.permute.xlu0 %65
  %69 = vset.pattern.permute.xlu0 0
  %70 = vperm.xlu0 %69, %v62
  %v71 = vpop.permute.xlu0 %70
  %v73 = vadd.f32 %v59, %v66
  %v74 = vadd.f32 %v60, %v71
  %v75 = vmax.f32 %v73, 0.0
  %v76 = vmax.f32 %v74, 0.0
  %v77 = vld [vmem:[%s3] sm:$0xff]
  %v78 = vld [vmem:[%s3 + $0x8] sm:$0x3]
  %v79 = vld [vmem:[%s4] sm:$0xff]
  %v80 = vld [vmem:[%s4 + $0x8] sm:$0x3]
  %82 = vset.pattern.permute.xlu0 0
  %83 = vperm.xlu0 %82, %v79
  %v84 = vpop.permute.xlu0 %83
  %87 = vset.pattern.permute.xlu0 0
  %88 = vperm.xlu0 %87, %v80
  %v89 = vpop.permute.xlu0 %88
  %vm91 = vcmask 80896
  %v93 = vsel %vm91, %v77, 0
  %v96 = vsel %vm91, %v78, 0
  %vm98 = vcmask 1041408
  %v100 = vsel %vm98, %v76, 0
  %102 = vmatprep.subr.mxu0 0.0
  %103 = vmatpush1.msra.mxu0 %v75
  %104 = vmatprep.subr.mxu0 0.0
  %105 = vmatpush1.msra.mxu0 %v100
  %106 = vmatprep.subr.mxu0 0.0
  %107 = vmatpush1.msra.mxu0 0.0
  %108 = vmatprep.subr.mxu0 0.0
  %109 = vmatpush1.msra.mxu0 0.0
  %110 = vmatprep.subr.mxu0 0.0
  %111 = vmatpush1.msra.mxu0 0.0
  %112 = vmatprep.subr.mxu0 0.0
  %113 = vmatpush1.msra.mxu0 0.0
  %114 = vmatprep.subr.mxu0 0.0
  %115 = vmatpush1.msra.mxu0 0.0
  %116 = vmatprep.subr.mxu0 0.0
  %117 = vmatpush1.msra.mxu0 0.0
  %118 = vmatprep.subr.mxu0 0.0
  %119 = vmatpush1.msra.mxu0 0.0
  %120 = vmatprep.subr.mxu0 0.0
  %121 = vmatpush1.msra.mxu0 0.0
  %122 = vmatprep.subr.mxu0 0.0
  %123 = vmatpush1.msra.mxu0 0.0
  %124 = vmatprep.subr.mxu0 0.0
  %125 = vmatpush1.msra.mxu0 0.0
  %126 = vmatprep.subr.mxu0 0.0
  %127 = vmatpush1.msra.mxu0 0.0
  %128 = vmatprep.subr.mxu0 0.0
  %129 = vmatpush1.msra.mxu0 0.0
  %130 = vmatprep.subr.mxu0 0.0
  %131 = vmatpush1.msra.mxu0 0.0
  %132 = vmatprep.subr.mxu0 0.0
  %133 = vmatpush1.msra.mxu0 0.0
  %134 = vmatprep.subr.mxu0 0.0
  %135 = vmatpush1.msra.mxu0 0.0
  %136 = vmatprep.subr.mxu0 0.0
  %137 = vmatpush1.msra.mxu0 0.0
  %138 = vmatprep.subr.mxu0 0.0
  %139 = vmatpush1.msra.mxu0 0.0
  %140 = vmatprep.subr.mxu0 0.0
  %141 = vmatpush1.msra.mxu0 0.0
  %142 = vmatprep.subr.mxu0 0.0
  %143 = vmatpush1.msra.mxu0 0.0
  %144 = vmatprep.subr.mxu0 0.0
  %145 = vmatpush1.msra.mxu0 0.0
  %146 = vmatprep.subr.mxu0 0.0
  %147 = vmatpush1.msra.mxu0 0.0
  %148 = vmatprep.subr.mxu0 0.0
  %149 = vmatpush1.msra.mxu0 0.0
  %150 = vmatprep.subr.mxu0 0.0
  %151 = vmatpush1.msra.mxu0 0.0
  %152 = vmatprep.subr.mxu0 0.0
  %153 = vmatpush1.msra.mxu0 0.0
  %154 = vmatprep.subr.mxu0 0.0
  %155 = vmatpush1.msra.mxu0 0.0
  %156 = vmatprep.subr.mxu0 0.0
  %157 = vmatpush1.msra.mxu0 0.0
  %158 = vmatprep.subr.mxu0 0.0
  %159 = vmatpush1.msra.mxu0 0.0
  %160 = vmatprep.subr.mxu0 0.0
  %161 = vmatpush1.msra.mxu0 0.0
  %162 = vmatprep.subr.mxu0 0.0
  %163 = vmatpush1.msra.mxu0 0.0
  %164 = vmatprep.subr.mxu0 0.0
  %165 = vmatpush1.msra.mxu0 0.0
  %166 = vmatprep.mubr.f32.mxu0 0.0
  %167 = vmatmul.mubr.f32.gmra.mrb[0].mxu0 %v93
  %v168 = vpop.f32.mrb[0].mxu0
  %v169 = vadd.f32 %v84, %v168
  %v170 = vpop.f32.mrb[0].mxu0
  %171 = vmatprep.mubr.f32.mxu0 0.0
  %172 = vmatmul.mubr.f32.gmra.mrb[0].mxu0 %v96
  %v173 = vpop.f32.mrb[0].mxu0
  %v174 = vadd.f32 %v89, %v173
  %v175 = vpop.f32.mrb[0].mxu0
  %176 = vdwg.mxu0
  %v177 = vmax.f32 %v169, 0.0
  %v178 = vmax.f32 %v174, 0.0
  %v179 = vld [vmem:[%s5] sm:$0x7]
  %v180 = vld [vmem:[%s6] sm:$0x7]
  %182 = vset.pattern.permute.xlu0 0
  %183 = vperm.xlu0 %182, %v180
  %v184 = vpop.permute.xlu0 %183
  %v187 = vsel %vm91, %v179, 0
  %v190 = vsel %vm98, %v178, 0
  %192 = vmatprep.subr.mxu0 0.0
  %193 = vmatpush1.msra.mxu0 %v177
  %194 = vmatprep.subr.mxu0 0.0
  %195 = vmatpush1.msra.mxu0 %v190
  %196 = vmatprep.subr.mxu0 0.0
  %197 = vmatpush1.msra.mxu0 0.0
  %198 = vmatprep.subr.mxu0 0.0
  %199 = vmatpush1.msra.mxu0 0.0
  %200 = vmatprep.subr.mxu0 0.0
  %201 = vmatpush1.msra.mxu0 0.0
  %202 = vmatprep.subr.mxu0 0.0
  %203 = vmatpush1.msra.mxu0 0.0
  %204 = vmatprep.subr.mxu0 0.0
  %205 = vmatpush1.msra.mxu0 0.0
  %206 = vmatprep.subr.mxu0 0.0
  %207 = vmatpush1.msra.mxu0 0.0
  %208 = vmatprep.subr.mxu0 0.0
  %209 = vmatpush1.msra.mxu0 0.0
  %210 = vmatprep.subr.mxu0 0.0
  %211 = vmatpush1.msra.mxu0 0.0
  %212 = vmatprep.subr.mxu0 0.0
  %213 = vmatpush1.msra.mxu0 0.0
  %214 = vmatprep.subr.mxu0 0.0
  %215 = vmatpush1.msra.mxu0 0.0
  %216 = vmatprep.subr.mxu0 0.0
  %217 = vmatpush1.msra.mxu0 0.0
  %218 = vmatprep.subr.mxu0 0.0
  %219 = vmatpush1.msra.mxu0 0.0
  %220 = vmatprep.subr.mxu0 0.0
  %221 = vmatpush1.msra.mxu0 0.0
  %222 = vmatprep.subr.mxu0 0.0
  %223 = vmatpush1.msra.mxu0 0.0
  %224 = vmatprep.subr.mxu0 0.0
  %225 = vmatpush1.msra.mxu0 0.0
  %226 = vmatprep.subr.mxu0 0.0
  %227 = vmatpush1.msra.mxu0 0.0
  %228 = vmatprep.subr.mxu0 0.0
  %229 = vmatpush1.msra.mxu0 0.0
  %230 = vmatprep.subr.mxu0 0.0
  %231 = vmatpush1.msra.mxu0 0.0
  %232 = vmatprep.subr.mxu0 0.0
  %233 = vmatpush1.msra.mxu0 0.0
  %234 = vmatprep.subr.mxu0 0.0
  %235 = vmatpush1.msra.mxu0 0.0
  %236 = vmatprep.subr.mxu0 0.0
  %237 = vmatpush1.msra.mxu0 0.0
  %238 = vmatprep.subr.mxu0 0.0
  %239 = vmatpush1.msra.mxu0 0.0
  %240 = vmatprep.subr.mxu0 0.0
  %241 = vmatpush1.msra.mxu0 0.0
  %242 = vmatprep.subr.mxu0 0.0
  %243 = vmatpush1.msra.mxu0 0.0
  %244 = vmatprep.subr.mxu0 0.0
  %245 = vmatpush1.msra.mxu0 0.0
  %246 = vmatprep.subr.mxu0 0.0
  %247 = vmatpush1.msra.mxu0 0.0
  %248 = vmatprep.subr.mxu0 0.0
  %249 = vmatpush1.msra.mxu0 0.0
  %250 = vmatprep.subr.mxu0 0.0
  %251 = vmatpush1.msra.mxu0 0.0
  %252 = vmatprep.subr.mxu0 0.0
  %253 = vmatpush1.msra.mxu0 0.0
  %254 = vmatprep.subr.mxu0 0.0
  %255 = vmatpush1.msra.mxu0 0.0
  %256 = vmatprep.mubr.f32.mxu0 0.0
  %257 = vmatmul.mubr.f32.gmra.mrb[0].mxu0 %v187
  %v258 = vpop.f32.mrb[0].mxu0
  %v259 = vadd.f32 %v184, %v258
  %v260 = vpop.f32.mrb[0].mxu0
  %261 = vdwg.mxu0
  %262 = vst [vmem:[%s7] sm:$0x7] %v259
  // Predicated region
  $region30: #{rps_model_forward.1} parent=0 // pred_check
    _
  $region31: #{rps_model_forward.1} parent=0 // pred_check_branch
    %264 = sbr.rel (0) target = $region33
  $region32: #{rps_model_forward.1} parent=0 // pred_region
    _
  $region33: #{rps_model_forward.1} parent=0 // pred_fallthru
    _
  // Predicated region
  $region34: #{rps_model_forward.1} parent=0 // pred_check
    _
  $region35: #{rps_model_forward.1} parent=0 // pred_check_branch
    %266 = sbr.rel (0) target = $region37
  $region36: #{rps_model_forward.1} parent=0 // pred_region
    _
  $region37: #{rps_model_forward.1} parent=0 // pred_fallthru
    _

</llo_original>
